<compile_context>
chip_gen: v5e
topology: v5e:2x2
jax: 0.10.0
libtpu: 0.0.40
codegen_flags: <defaults>
</compile_context>

<pallas_src>
import functools

import jax
import jax.numpy as jnp
from jax import lax
from jax.experimental import pallas as pl
from jax.experimental.pallas import tpu as pltpu


def _stats_kernel(cp_ref, w_ref, sum_ref, sq_ref):
    """Per-tile partial sum / sum-of-squares of the conv channels (global BN stats).

    Zero-padded tail columns give conv == 0 (no bias), so they contribute
    exactly 0 to both sums; the true element count M is applied in the wrapper.
    """
    conv = jnp.dot(w_ref[...], cp_ref[...],
                   preferred_element_type=jnp.float32)          # (Cm, TM), M on lanes
    sum_ref[...] = jnp.sum(conv, axis=1, keepdims=True)         # (Cm, 1)
    sq_ref[...] = jnp.sum(conv * conv, axis=1, keepdims=True)   # (Cm, 1)


def _apply_kernel(cp_ref, pool_ref, wbn_ref, scale_p_ref, shift_ref, alpha_ref,
                  o_ref, *, cin, cm):
    """Conv (MXU, BN scale pre-folded into weights) + shift + PReLU; pool branch
    gets scale+shift+PReLU.  Lane-dense (Cout, TM) store, channel order matches
    torch.cat((pool, conv), dim=1) via disjoint sublane slices (no concat)."""
    conv = jnp.dot(wbn_ref[...], cp_ref[...],
                   preferred_element_type=jnp.float32)           # (Cm, TM)
    a = alpha_ref[0]                                             # PReLU scalar (SMEM)
    zp = pool_ref[...] * scale_p_ref[...] + shift_ref[0:cin, :]  # (Cin, TM)
    zc = conv + shift_ref[cin:cin + cm, :]                       # (Cm, TM)
    o_ref[0:cin, :] = jnp.where(zp >= 0, zp, a * zp)
    o_ref[cin:cin + cm, :] = jnp.where(zc >= 0, zc, a * zc)


def initial_block(x, w, gamma, beta, alpha, *, block_m=65536):
    """x: (N, Cin, H, W) f32, w: (out_ch-1, Cin, 3, 3), gamma/beta: (out_ch,), alpha scalar."""
    N, Cin, H, W = x.shape
    Cm = w.shape[0]                       # out_ch - 1
    Cout = Cin + Cm                       # == out_ch when Cin == 1
    assert gamma.shape == (Cout,) and beta.shape == (Cout,)
    Ho = (H + 2 - 3) // 2 + 1
    Wo = (W + 2 - 3) // 2 + 1
    P = Ho * Wo                           # pixels per image
    M = N * P                             # total elements per channel (BN count)
    K = 9 * Cin

    x = x.astype(jnp.float32)

    # ---- im2col for the conv branch, built directly in (N, K, P) layout ----
    # (tap-major, channel-minor on K; no transpose: stack on axis=1 then reshape)
    xc = jnp.pad(x, ((0, 0), (0, 0), (1, 1), (1, 1)))            # zero pad (conv semantics)
    taps = [xc[:, :, ky:ky + 2 * Ho:2, kx:kx + 2 * Wo:2]
            for ky in range(3) for kx in range(3)]               # 9 x (N, Cin, Ho, Wo)
    patches = jnp.stack(taps, axis=1).reshape(N, K, P)           # (N, K, P)

    # ---- max-pool branch stays in XLA; only its (N, Cin, P) result is shipped ----
    pool = lax.reduce_window(x, -jnp.inf, lax.max, (1, 1, 3, 3), (1, 1, 2, 2),
                             ((0, 0), (0, 0), (1, 1), (1, 1)))   # (N, Cin, Ho, Wo)
    pool = pool.reshape(N, Cin, P)                               # free view

    # Pool-channel BN statistics in XLA (tiny; fuses with reduce_window).
    pool_s1 = jnp.sum(pool, axis=(0, 2))                         # (Cin,)
    pool_s2 = jnp.sum(pool * pool, axis=(0, 2))                  # (Cin,)

    # ---- weights: w[co, c, ky, kx] -> w2[co, (ky*3+kx)*Cin + c] ----
    w2 = jnp.transpose(w, (0, 2, 3, 1)).reshape(Cm, K).astype(jnp.float32)

    # ---- tile the per-image pixel axis (lanes) with a VMEM budget ----
    LANE = 128
    block_m = max(LANE, (block_m // LANE) * LANE)
    bytes_per_col = 4 * (K + Cin + Cout)                 # f32 patches + pool + out per column
    VMEM_BUDGET = 48 * 1024 * 1024                       # v7x-safe (64 MiB physical per TC)
    VMEM_MARGIN = 6 * 1024 * 1024
    tm_cap = max(LANE, ((VMEM_BUDGET - VMEM_MARGIN) // (2 * bytes_per_col)) // LANE * LANE)
    max_tm = min(block_m, tm_cap)

    if P % LANE == 0 and P > max_tm:
        tm = max_tm
    elif P % LANE == 0:
        tm = P
        if N == 1 and P >= 2 * LANE:
            # v7x has 2 TensorCores: make sure the single-image case still has
            # >= 2 parallel grid steps.
            tm = ((P // 2 + LANE - 1) // LANE) * LANE
    elif P <= max_tm:
        tm = P                                           # full-extent block, no padding
    else:
        tm = max_tm                                      # zero-padded tail (stats-neutral)
    n_tiles = -(-P // tm)
    p_pad = n_tiles * tm
    if p_pad != P:
        patches = jnp.pad(patches, ((0, 0), (0, 0), (0, p_pad - P)))
        pool = jnp.pad(pool, ((0, 0), (0, 0), (0, p_pad - P)))

    vmem_limit = int(min(VMEM_BUDGET,
                         max(32 * 1024 * 1024, 2 * bytes_per_col * tm + VMEM_MARGIN)))
    cparams = pltpu.CompilerParams(
        dimension_semantics=("parallel", "parallel"),    # N x pixel-tiles, all independent
        vmem_limit_bytes=vmem_limit,
    )
    grid = (N, n_tiles)

    # ---- pass 1: per-tile partial sums for global (training-mode) BN statistics ----
    sum_p, sq_p = pl.pallas_call(
        _stats_kernel,
        out_shape=(jax.ShapeDtypeStruct((N, n_tiles, Cm, 1), jnp.float32),
                   jax.ShapeDtypeStruct((N, n_tiles, Cm, 1), jnp.float32)),
        grid=grid,
        in_specs=[
            pl.BlockSpec((None, K, tm), lambda n, i: (n, 0, i)),
            pl.BlockSpec((Cm, K), lambda n, i: (0, 0)),
        ],
        out_specs=(
            pl.BlockSpec((None, None, Cm, 1), lambda n, i: (n, i, 0, 0)),
            pl.BlockSpec((None, None, Cm, 1), lambda n, i: (n, i, 0, 0)),
        ),
        compiler_params=cparams,
    )(patches, w2)

    conv_s1 = jnp.sum(sum_p, axis=(0, 1)).reshape(Cm)
    conv_s2 = jnp.sum(sq_p, axis=(0, 1)).reshape(Cm)
    s1 = jnp.concatenate([pool_s1, conv_s1])             # channel order: [pool, conv]
    s2 = jnp.concatenate([pool_s2, conv_s2])
    mean = s1 / M
    var = jnp.maximum(s2 / M - mean * mean, 0.0)          # biased batch variance
    scale = gamma.astype(jnp.float32) * lax.rsqrt(var + 1e-5)
    shift = beta.astype(jnp.float32) - mean * scale

    # Fold conv-channel BN scale into the weights; pool scale stays per-channel.
    w2_bn = w2 * scale[Cin:].reshape(Cm, 1)
    scale_pool = scale[:Cin].reshape(Cin, 1)
    shift2 = shift.reshape(Cout, 1)
    alpha1 = jnp.asarray(alpha, jnp.float32).reshape(1)

    # ---- pass 2: conv + BN + PReLU, NCHW-native (N, Cout, P) output ----
    out = pl.pallas_call(
        functools.partial(_apply_kernel, cin=Cin, cm=Cm),
        out_shape=jax.ShapeDtypeStruct((N, Cout, p_pad), jnp.float32),
        grid=grid,
        in_specs=[
            pl.BlockSpec((None, K, tm), lambda n, i: (n, 0, i)),
            pl.BlockSpec((None, Cin, tm), lambda n, i: (n, 0, i)),
            pl.BlockSpec((Cm, K), lambda n, i: (0, 0)),
            pl.BlockSpec((Cin, 1), lambda n, i: (0, 0)),
            pl.BlockSpec((Cout, 1), lambda n, i: (0, 0)),
            pl.BlockSpec(memory_space=pltpu.MemorySpace.SMEM),
        ],
        out_specs=pl.BlockSpec((None, Cout, tm), lambda n, i: (n, 0, i)),
        compiler_params=cparams,
    )(patches, pool, w2_bn, scale_pool, shift2, alpha1)

    if p_pad != P:
        out = out[:, :, :P]
    return out.reshape(N, Cout, Ho, Wo)                   # free view (already NCHW order)


def reference(x, w, gamma, beta, alpha):
    """Pure-JAX reference of the PyTorch forward (training-mode BN)."""
    conv = lax.conv_general_dilated(
        x, w, window_strides=(2, 2), padding=((1, 1), (1, 1)),
        dimension_numbers=("NCHW", "OIHW", "NCHW"))
    pool = lax.reduce_window(
        x, -jnp.inf, lax.max, (1, 1, 3, 3), (1, 1, 2, 2),
        ((0, 0), (0, 0), (1, 1), (1, 1)))
    y = jnp.concatenate([pool, conv], axis=1)
    mean = y.mean(axis=(0, 2, 3), keepdims=True)
    var = ((y - mean) ** 2).mean(axis=(0, 2, 3), keepdims=True)
    z = (y - mean) / jnp.sqrt(var + 1e-5)
    z = z * gamma.reshape(1, -1, 1, 1) + beta.reshape(1, -1, 1, 1)
    return jnp.where(z >= 0, z, alpha * z)


if __name__ == "__main__":
    key = jax.random.PRNGKey(0)
    k1, k2, k3, k4 = jax.random.split(key, 4)

    N, in_ch, out_ch, H, W = 2, 1, 8, 16, 16   # module requires in_ch == 1 (see note)
    x = jax.random.normal(k1, (N, in_ch, H, W), jnp.float32)
    w = 0.1 * jax.random.normal(k2, (out_ch - 1, in_ch, 3, 3), jnp.float32)
    gamma = 1.0 + 0.1 * jax.random.normal(k3, (out_ch,), jnp.float32)
    beta = 0.1 * jax.random.normal(k4, (out_ch,), jnp.float32)
    alpha = 0.25  # PReLU default (single shared parameter)

    y = jax.jit(initial_block)(x, w, gamma, beta, alpha)
    y = jax.block_until_ready(y)

    y_ref = reference(x, w, gamma, beta, alpha)
    assert y.shape == (N, out_ch, H // 2, W // 2), y.shape
    max_err = float(jnp.max(jnp.abs(y - y_ref)))
    assert jnp.allclose(y, y_ref, atol=1e-4, rtol=1e-4), f"max_err={max_err}"
    print("KERNEL_OK")
</pallas_src>

<mosaic_0001>
module attributes {stable_mosaic.version = 11 : i64} {
  func.func @_stats_kernel(%arg0: i32, %arg1: i32, %arg2: memref<1x9x64xf32, #tpu.memory_space<vmem>>, %arg3: memref<7x9xf32, #tpu.memory_space<vmem>>, %arg4: memref<1x1x7x1xf32, #tpu.memory_space<vmem>>, %arg5: memref<1x1x7x1xf32, #tpu.memory_space<vmem>>) attributes {dimension_semantics = [#tpu.dimension_semantics<parallel>, #tpu.dimension_semantics<parallel>], iteration_bounds = array<i64: 2, 1>, scalar_prefetch = 0 : i64, scratch_operands = 0 : i64, tpu.core_type = #tpu.core_type<tc>, window_params = [{transform_indices = @transform_0, window_bounds = array<i64: 1, 9, 64>}, {pipeline_mode = #tpu.pipeline_mode<synchronous>, transform_indices = @transform_1, window_bounds = array<i64: 7, 9>}, {transform_indices = @transform_2, window_bounds = array<i64: 1, 1, 7, 1>}, {transform_indices = @transform_3, window_bounds = array<i64: 1, 1, 7, 1>}]} {
    %c0 = arith.constant 0 : index
    %c0_0 = arith.constant 0 : index
    %0 = vector.load %arg3[%c0, %c0_0] : memref<7x9xf32, #tpu.memory_space<vmem>>, vector<7x9xf32>
    %c0_1 = arith.constant 0 : index
    %c0_2 = arith.constant 0 : index
    %c0_3 = arith.constant 0 : index
    %1 = vector.load %arg2[%c0_1, %c0_2, %c0_3] : memref<1x9x64xf32, #tpu.memory_space<vmem>>, vector<1x9x64xf32>
    %2 = vector.shape_cast %1 : vector<1x9x64xf32> to vector<9x64xf32>
    %cst = arith.constant dense<0.000000e+00> : vector<7x64xf32>
    %3 = tpu.matmul %0, %2, %cst {dimension_numbers = #tpu.dot_dimension_numbers<[1], [0], [0], [1], [0, 0, 1, 1], [], []>} : vector<7x9xf32>, vector<9x64xf32>, vector<7x64xf32> -> vector<7x64xf32>
    %cst_4 = arith.constant dense<0.000000e+00> : vector<7xf32>
    %4 = vector.multi_reduction <add>, %3, %cst_4 [1] : vector<7x64xf32> to vector<7xf32>
    %5 = vector.shape_cast %4 : vector<7xf32> to vector<7x1xf32>
    %c0_5 = arith.constant 0 : index
    %c0_6 = arith.constant 0 : index
    %c0_7 = arith.constant 0 : index
    %c0_8 = arith.constant 0 : index
    %6 = vector.load %arg4[%c0_5, %c0_6, %c0_7, %c0_8] : memref<1x1x7x1xf32, #tpu.memory_space<vmem>>, vector<1x1x7x1xf32>
    %7 = vector.shape_cast %6 : vector<1x1x7x1xf32> to vector<7x1xf32>
    %8 = vector.shape_cast %5 : vector<7x1xf32> to vector<1x1x7x1xf32>
    tpu.vector_store %arg4[%c0_5, %c0_6, %c0_7, %c0_8], %8 {strides = array<i32>} : memref<1x1x7x1xf32, #tpu.memory_space<vmem>>, vector<1x1x7x1xf32>,
    %9 = arith.mulf %3, %3 : vector<7x64xf32>
    %cst_9 = arith.constant dense<0.000000e+00> : vector<7xf32>
    %10 = vector.multi_reduction <add>, %9, %cst_9 [1] : vector<7x64xf32> to vector<7xf32>
    %11 = vector.shape_cast %10 : vector<7xf32> to vector<7x1xf32>
    %c0_10 = arith.constant 0 : index
    %c0_11 = arith.constant 0 : index
    %c0_12 = arith.constant 0 : index
    %c0_13 = arith.constant 0 : index
    %12 = vector.load %arg5[%c0_10, %c0_11, %c0_12, %c0_13] : memref<1x1x7x1xf32, #tpu.memory_space<vmem>>, vector<1x1x7x1xf32>
    %13 = vector.shape_cast %12 : vector<1x1x7x1xf32> to vector<7x1xf32>
    %14 = vector.shape_cast %11 : vector<7x1xf32> to vector<1x1x7x1xf32>
    tpu.vector_store %arg5[%c0_10, %c0_11, %c0_12, %c0_13], %14 {strides = array<i32>} : memref<1x1x7x1xf32, #tpu.memory_space<vmem>>, vector<1x1x7x1xf32>,
    return
  }
  func.func @transform_0(%arg0: i32, %arg1: i32) -> (i32, i32, i32) {
    %c0_i32 = arith.constant 0 : i32
    %c0_i32_0 = arith.constant 0 : i32
    return %arg0, %c0_i32, %arg1 : i32, i32, i32
  }
  func.func @transform_1(%arg0: i32, %arg1: i32) -> (i32, i32) {
    %c0_i32 = arith.constant 0 : i32
    %c0_i32_0 = arith.constant 0 : i32
    %c0_i32_1 = arith.constant 0 : i32
    return %c0_i32, %c0_i32_0 : i32, i32
  }
  func.func @transform_2(%arg0: i32, %arg1: i32) -> (i32, i32, i32, i32) {
    %c0_i32 = arith.constant 0 : i32
    %c0_i32_0 = arith.constant 0 : i32
    %c0_i32_1 = arith.constant 0 : i32
    return %arg0, %arg1, %c0_i32, %c0_i32_0 : i32, i32, i32, i32
  }
  func.func @transform_3(%arg0: i32, %arg1: i32) -> (i32, i32, i32, i32) {
    %c0_i32 = arith.constant 0 : i32
    %c0_i32_0 = arith.constant 0 : i32
    %c0_i32_1 = arith.constant 0 : i32
    return %arg0, %arg1, %c0_i32, %c0_i32_0 : i32, i32, i32, i32
  }
}

module attributes {stable_mosaic.version = 11 : i64} {
  func.func @_apply_kernel(%arg0: i32, %arg1: i32, %arg2: memref<1x9x64xf32, #tpu.memory_space<vmem>>, %arg3: memref<1x1x64xf32, #tpu.memory_space<vmem>>, %arg4: memref<7x9xf32, #tpu.memory_space<vmem>>, %arg5: memref<1x1xf32, #tpu.memory_space<vmem>>, %arg6: memref<8x1xf32, #tpu.memory_space<vmem>>, %arg7: memref<1xf32, #tpu.memory_space<smem>>, %arg8: memref<1x8x64xf32, #tpu.memory_space<vmem>>) attributes {dimension_semantics = [#tpu.dimension_semantics<parallel>, #tpu.dimension_semantics<parallel>], iteration_bounds = array<i64: 2, 1>, scalar_prefetch = 0 : i64, scratch_operands = 0 : i64, tpu.core_type = #tpu.core_type<tc>, window_params = [{transform_indices = @transform_0, window_bounds = array<i64: 1, 9, 64>}, {transform_indices = @transform_1, window_bounds = array<i64: 1, 1, 64>}, {pipeline_mode = #tpu.pipeline_mode<synchronous>, transform_indices = @transform_2, window_bounds = array<i64: 7, 9>}, {pipeline_mode = #tpu.pipeline_mode<synchronous>, transform_indices = @transform_3, window_bounds = array<i64: 1, 1>}, {pipeline_mode = #tpu.pipeline_mode<synchronous>, transform_indices = @transform_4, window_bounds = array<i64: 8, 1>}, {transform_indices = @transform_5, window_bounds = array<i64: 1>}, {transform_indices = @transform_6, window_bounds = array<i64: 1, 8, 64>}]} {
    %c0 = arith.constant 0 : index
    %c0_0 = arith.constant 0 : index
    %0 = vector.load %arg4[%c0, %c0_0] : memref<7x9xf32, #tpu.memory_space<vmem>>, vector<7x9xf32>
    %c0_1 = arith.constant 0 : index
    %c0_2 = arith.constant 0 : index
    %c0_3 = arith.constant 0 : index
    %1 = vector.load %arg2[%c0_1, %c0_2, %c0_3] : memref<1x9x64xf32, #tpu.memory_space<vmem>>, vector<1x9x64xf32>
    %2 = vector.shape_cast %1 : vector<1x9x64xf32> to vector<9x64xf32>
    %cst = arith.constant dense<0.000000e+00> : vector<7x64xf32>
    %3 = tpu.matmul %0, %2, %cst {dimension_numbers = #tpu.dot_dimension_numbers<[1], [0], [0], [1], [0, 0, 1, 1], [], []>} : vector<7x9xf32>, vector<9x64xf32>, vector<7x64xf32> -> vector<7x64xf32>
    %c0_4 = arith.constant 0 : index
    %4 = memref.load %arg7[%c0_4] : memref<1xf32, #tpu.memory_space<smem>>
    %c0_5 = arith.constant 0 : index
    %c0_6 = arith.constant 0 : index
    %c0_7 = arith.constant 0 : index
    %5 = vector.load %arg3[%c0_5, %c0_6, %c0_7] : memref<1x1x64xf32, #tpu.memory_space<vmem>>, vector<1x1x64xf32>
    %6 = vector.shape_cast %5 : vector<1x1x64xf32> to vector<1x64xf32>
    %c0_8 = arith.constant 0 : index
    %c0_9 = arith.constant 0 : index
    %7 = vector.load %arg5[%c0_8, %c0_9] : memref<1x1xf32, #tpu.memory_space<vmem>>, vector<1x1xf32>
    %8 = vector.broadcast %7 : vector<1x1xf32> to vector<1x64xf32>
    %9 = arith.mulf %6, %8 : vector<1x64xf32>
    %c0_10 = arith.constant 0 : index
    %c0_11 = arith.constant 0 : index
    %10 = vector.load %arg6[%c0_10, %c0_11] : memref<8x1xf32, #tpu.memory_space<vmem>>, vector<1x1xf32>
    %11 = vector.broadcast %10 : vector<1x1xf32> to vector<1x64xf32>
    %12 = arith.addf %9, %11 : vector<1x64xf32>
    %c1 = arith.constant 1 : index
    %c0_12 = arith.constant 0 : index
    %13 = vector.load %arg6[%c1, %c0_12] : memref<8x1xf32, #tpu.memory_space<vmem>>, vector<7x1xf32>
    %14 = vector.broadcast %13 : vector<7x1xf32> to vector<7x64xf32>
    %15 = arith.addf %3, %14 : vector<7x64xf32>
    %cst_13 = arith.constant 0.000000e+00 : f32
    %16 = vector.broadcast %cst_13 : f32 to vector<1x64xf32>
    %17 = arith.cmpf oge, %12, %16 : vector<1x64xf32>
    %18 = vector.broadcast %4 : f32 to vector<1x64xf32>
    %19 = arith.mulf %18, %12 : vector<1x64xf32>
    %20 = arith.select %17, %12, %19 : vector<1x64xi1>, vector<1x64xf32>
    %c0_14 = arith.constant 0 : index
    %c0_15 = arith.constant 0 : index
    %c0_16 = arith.constant 0 : index
    %21 = vector.load %arg8[%c0_14, %c0_15, %c0_16] : memref<1x8x64xf32, #tpu.memory_space<vmem>>, vector<1x1x64xf32>
    %22 = vector.shape_cast %21 : vector<1x1x64xf32> to vector<1x64xf32>
    %23 = vector.shape_cast %20 : vector<1x64xf32> to vector<1x1x64xf32>
    tpu.vector_store %arg8[%c0_14, %c0_15, %c0_16], %23 {strides = array<i32>} : memref<1x8x64xf32, #tpu.memory_space<vmem>>, vector<1x1x64xf32>,
    %cst_17 = arith.constant 0.000000e+00 : f32
    %24 = vector.broadcast %cst_17 : f32 to vector<7x64xf32>
    %25 = arith.cmpf oge, %15, %24 : vector<7x64xf32>
    %26 = vector.broadcast %4 : f32 to vector<7x64xf32>
    %27 = arith.mulf %26, %15 : vector<7x64xf32>
    %28 = arith.select %25, %15, %27 : vector<7x64xi1>, vector<7x64xf32>
    %c0_18 = arith.constant 0 : index
    %c1_19 = arith.constant 1 : index
    %c0_20 = arith.constant 0 : index
    %29 = vector.load %arg8[%c0_18, %c1_19, %c0_20] : memref<1x8x64xf32, #tpu.memory_space<vmem>>, vector<1x7x64xf32>
    %30 = vector.shape_cast %29 : vector<1x7x64xf32> to vector<7x64xf32>
    %31 = vector.shape_cast %28 : vector<7x64xf32> to vector<1x7x64xf32>
    tpu.vector_store %arg8[%c0_18, %c1_19, %c0_20], %31 {strides = array<i32>} : memref<1x8x64xf32, #tpu.memory_space<vmem>>, vector<1x7x64xf32>,
    return
  }
  func.func @transform_0(%arg0: i32, %arg1: i32) -> (i32, i32, i32) {
    %c0_i32 = arith.constant 0 : i32
    %c0_i32_0 = arith.constant 0 : i32
    return %arg0, %c0_i32, %arg1 : i32, i32, i32
  }
  func.func @transform_1(%arg0: i32, %arg1: i32) -> (i32, i32, i32) {
    %c0_i32 = arith.constant 0 : i32
    %c0_i32_0 = arith.constant 0 : i32
    return %arg0, %c0_i32, %arg1 : i32, i32, i32
  }
  func.func @transform_2(%arg0: i32, %arg1: i32) -> (i32, i32) {
    %c0_i32 = arith.constant 0 : i32
    %c0_i32_0 = arith.constant 0 : i32
    %c0_i32_1 = arith.constant 0 : i32
    return %c0_i32, %c0_i32_0 : i32, i32
  }
  func.func @transform_3(%arg0: i32, %arg1: i32) -> (i32, i32) {
    %c0_i32 = arith.constant 0 : i32
    %c0_i32_0 = arith.constant 0 : i32
    %c0_i32_1 = arith.constant 0 : i32
    return %c0_i32, %c0_i32_0 : i32, i32
  }
  func.func @transform_4(%arg0: i32, %arg1: i32) -> (i32, i32) {
    %c0_i32 = arith.constant 0 : i32
    %c0_i32_0 = arith.constant 0 : i32
    %c0_i32_1 = arith.constant 0 : i32
    return %c0_i32, %c0_i32_0 : i32, i32
  }
  func.func @transform_5(%arg0: i32, %arg1: i32) -> i32 {
    %c0_i32 = arith.constant 0 : i32
    %c0_i32_0 = arith.constant 0 : i32
    return %c0_i32 : i32
  }
  func.func @transform_6(%arg0: i32, %arg1: i32) -> (i32, i32, i32) {
    %c0_i32 = arith.constant 0 : i32
    %c0_i32_0 = arith.constant 0 : i32
    return %arg0, %c0_i32, %arg1 : i32, i32, i32
  }
}

</mosaic_0001>

<llo_original>
// kernel: initial_block.2
$region0: #{initial_block.2}
  #allocation0 [shape = 'u32[]', space=smem, size = 0x4, offset = 0x4, fixed_abs, tag = 'smem constant byte address 0x4 - core index']
  #allocation1 [shape = 'u32[72,128]{1,0:T(1,128)}', space=vmem, size = 0x9000, scoped, tag = 'internal scratch']
  %s0 = inlined_call_operand.vmem [shape: f32[2,9,64], index: 0, kind: input, shape index: {}]
  %s1 = inlined_call_operand.vmem [shape: f32[7,9], index: 1, kind: input, shape index: {}]
  %s2 = inlined_call_operand.vmem [shape: f32[2,1,7,1], index: 2, kind: output, shape index: {0}]
  %s3 = inlined_call_operand.vmem [shape: f32[2,1,7,1], index: 3, kind: output, shape index: {1}]
  %4 = xla_tuple %s2, %s3
  %s5 = sld [smem:[#allocation0]]
  $region49: #{initial_block.2} parent=0
    _
  %s7 = ssub.s32 1, %s5
  %s8 = scalar_select 0, %s7, %s5
  loop: start=0, step=1, limit=4
  $region2: #{initial_block.2} parent=0 // loop_pre_header
    _
  $region3: #{initial_block.2} parent=0 // loop_header
    %s10 = sphi 0, %s14
    %p11 = scmp.ge.s32.totalorder %s10, 4
    %s17 = sphi 0, %s29
    %s18 = sphi 0, %s25
    %s19 = sphi 0, %s17
    %s20 = sphi 0, %s18
    %s21 = sphi 0, %s19
    %s22 = sphi 0, %s20
    %s34 = sphi 0, %s36
    %s37 = sphi 0, %s34
    %s38 = sphi 0, %s37
    %s54 = sphi 0, %s38
    %s58 = sphi 0, %s58
    %s60 = sphi 0, %s58
    %s61 = sphi 0, %s60
    %s75 = sphi 0, %s61
    %s83 = sphi 0, %s85
    %s86 = sphi 0, %s83
    %s87 = sphi 0, %s86
    %s103 = sphi 0, %s87
    %s111 = sphi 0, %s113
    %s114 = sphi 0, %s111
    %s115 = sphi 0, %s114
    %s131 = sphi 0, %s115
  $region4: #{initial_block.2} parent=0 // loop_header_branch
    %13 = sbr.rel (%p11) target = $region8
  $region5: #{initial_block.2} parent=0 // loop_body
    %s15 = ssub.s32 %s10, 1
    %s16 = ssub.s32 %s10, 2
    %s23 = sadd.s32 1, %s18
    %p24 = scmp.ge.s32.totalorder %s23, 1
    %s25 = scalar_select %p24, 0, %s23
    %s26 = sadd.s32 1, %s17
    %s27 = scalar_select %p24, %s26, %s17
    %p28 = scmp.ge.s32.totalorder %s27, 2
    %s29 = scalar_select %p28, 0, %s27
    %s30 = ssub.s32 %s17, %s29
    %s31 = ssub.s32 %s18, %s25
    %s32 = sor.u32 %s30, %s31
    %p33 = scmp.eq.s32.totalorder %s32, 0
    %s35 = sadd.s32 %s34, 1
    %s36 = scalar_select %p33, %s34, %s35
    %p39 = pneg %p33
    %p40 = scmp.eq.s32.totalorder %s10, 1
    %p41 = por %p39, %p40
    %p42 = scmp.ne.s32.totalorder %s34, %s37
    %p43 = scmp.eq.s32.totalorder %s10, 0
    %p44 = por %p42, %p43
    %p45 = scmp.ne.s32.totalorder %s34, %s37
    %p46 = scmp.eq.s32.totalorder %s15, 1
    %p47 = por %p45, %p46
    %p48 = scmp.ne.s32.totalorder %s37, %s38
    %p49 = scmp.eq.s32.totalorder %s15, 0
    %p50 = por %p48, %p49
    %p51 = scmp.ne.s32.totalorder %s37, %s38
    %p52 = scmp.eq.s32.totalorder %s16, 1
    %p53 = por %p51, %p52
    %p55 = scmp.ne.s32.totalorder %s38, %s54
    %p56 = scmp.eq.s32.totalorder %s16, 0
    %p57 = por %p55, %p56
    %s59 = sadd.s32 %s58, 1
    %p62 = scmp.eq.s32.totalorder %s10, 1
    %p63 = scmp.ne.s32.totalorder %s58, %s60
    %p64 = scmp.eq.s32.totalorder %s10, 0
    %p65 = por %p63, %p64
    %p66 = scmp.ne.s32.totalorder %s58, %s60
    %p67 = scmp.eq.s32.totalorder %s15, 1
    %p68 = por %p66, %p67
    %p69 = scmp.ne.s32.totalorder %s60, %s61
    %p70 = scmp.eq.s32.totalorder %s15, 0
    %p71 = por %p69, %p70
    %p72 = scmp.ne.s32.totalorder %s60, %s61
    %p73 = scmp.eq.s32.totalorder %s16, 1
    %p74 = por %p72, %p73
    %p76 = scmp.ne.s32.totalorder %s61, %s75
    %p77 = scmp.eq.s32.totalorder %s16, 0
    %p78 = por %p76, %p77
    %s79 = ssub.s32 %s17, %s29
    %s80 = ssub.s32 %s18, %s25
    %s81 = sor.u32 %s79, %s80
    %p82 = scmp.eq.s32.totalorder %s81, 0
    %s84 = sadd.s32 %s83, 1
    %s85 = scalar_select %p82, %s83, %s84
    %p88 = pneg %p82
    %p89 = scmp.eq.s32.totalorder %s10, 1
    %p90 = por %p88, %p89
    %p91 = scmp.ne.s32.totalorder %s83, %s86
    %p92 = scmp.eq.s32.totalorder %s10, 0
    %p93 = por %p91, %p92
    %p94 = scmp.ne.s32.totalorder %s83, %s86
    %p95 = scmp.eq.s32.totalorder %s15, 1
    %p96 = por %p94, %p95
    %p97 = scmp.ne.s32.totalorder %s86, %s87
    %p98 = scmp.eq.s32.totalorder %s15, 0
    %p99 = por %p97, %p98
    %p100 = scmp.ne.s32.totalorder %s86, %s87
    %p101 = scmp.eq.s32.totalorder %s16, 1
    %p102 = por %p100, %p101
    %p104 = scmp.ne.s32.totalorder %s87, %s103
    %p105 = scmp.eq.s32.totalorder %s16, 0
    %p106 = por %p104, %p105
    %s107 = ssub.s32 %s17, %s29
    %s108 = ssub.s32 %s18, %s25
    %s109 = sor.u32 %s107, %s108
    %p110 = scmp.eq.s32.totalorder %s109, 0
    %s112 = sadd.s32 %s111, 1
    %s113 = scalar_select %p110, %s111, %s112
    %p116 = pneg %p110
    %p117 = scmp.eq.s32.totalorder %s10, 1
    %p118 = por %p116, %p117
    %p119 = scmp.ne.s32.totalorder %s111, %s114
    %p120 = scmp.eq.s32.totalorder %s10, 0
    %p121 = por %p119, %p120
    %p122 = scmp.ne.s32.totalorder %s111, %s114
    %p123 = scmp.eq.s32.totalorder %s15, 1
    %p124 = por %p122, %p123
    %p125 = scmp.ne.s32.totalorder %s114, %s115
    %p126 = scmp.eq.s32.totalorder %s15, 0
    %p127 = por %p125, %p126
    %p128 = scmp.ne.s32.totalorder %s114, %s115
    %p129 = scmp.eq.s32.totalorder %s16, 1
    %p130 = por %p128, %p129
    %p132 = scmp.ne.s32.totalorder %s115, %s131
    %p133 = scmp.eq.s32.totalorder %s16, 0
    %p134 = por %p132, %p133
    %p135 = scmp.le.s32.totalorder 1, %s10
    %p136 = scmp.lt.s32.totalorder %s10, 3
    %p137 = pnand %p135, %p136
    %p138 = pneg %p137
    // Predicated region
    $region9: #{initial_block.2} parent=5 // pred_check
      _
    $region10: #{initial_block.2} parent=5 // pred_check_branch
      %140 = sbr.rel (%p137) target = $region12
    $region11: #{initial_block.2} parent=5 // pred_region
      %s141 = ssub.s32 %s10, 1
      // Predicated region
      $region13: #{initial_block.2} parent=11 // pred_check
        %p142 = pneg %p71
      $region14: #{initial_block.2} parent=11 // pred_check_branch
        %144 = sbr.rel (%p142) target = $region16
      $region15: #{initial_block.2} parent=11 // pred_region
        _
      $region16: #{initial_block.2} parent=11 // pred_fallthru
        _
    $region12: #{initial_block.2} parent=5 // pred_fallthru
      _
    %p145 = scmp.lt.s32.totalorder %s10, 2
    // Predicated region
    $region17: #{initial_block.2} parent=5 // pred_check
      %p146 = pneg %p145
    $region18: #{initial_block.2} parent=5 // pred_check_branch
      %148 = sbr.rel (%p146) target = $region20
    $region19: #{initial_block.2} parent=5 // pred_region
      // Predicated region
      $region21: #{initial_block.2} parent=19 // pred_check
        %p149 = pneg %p44
      $region22: #{initial_block.2} parent=19 // pred_check_branch
        %151 = sbr.rel (%p149) target = $region24
      $region23: #{initial_block.2} parent=19 // pred_region
        %p152 = scmp.lt.s32.totalorder %s17, 1
        %s153 = scalar_select %p152, %s17, 1
        %p154 = scmp.lt.s32.totalorder %s18, 0
        %s155 = scalar_select %p154, %s18, 0
        %s156 = smul.addr %s153, 2
        %s157 = sadd.s32 %s155, %s156
        %s158 = smul.addr %s157, 8
        %s159 = scalar_lea.vmem %s0, %s158
      $region24: #{initial_block.2} parent=19 // pred_fallthru
        _
    $region20: #{initial_block.2} parent=5 // pred_fallthru
      _
    %p160 = scmp.le.s32.totalorder 1, %s10
    %p161 = scmp.lt.s32.totalorder %s10, 3
    %p162 = pnand %p160, %p161
    %p163 = pneg %p162
    // Predicated region
    $region25: #{initial_block.2} parent=5 // pred_check
      _
    $region26: #{initial_block.2} parent=5 // pred_check_branch
      %165 = sbr.rel (%p162) target = $region28
    $region27: #{initial_block.2} parent=5 // pred_region
      %s166 = ssub.s32 %s10, 1
      %p167 = scmp.lt.s32.totalorder %s19, 1
      %s168 = scalar_select %p167, %s19, 1
      %p169 = scmp.lt.s32.totalorder %s20, 0
      %s170 = scalar_select %p169, %s20, 0
      %s171 = smul.addr %s168, 2
      %s172 = sadd.s32 %s170, %s171
      %s173 = smul.addr %s172, 8
      %s174 = scalar_lea.vmem %s0, %s173
      %p175 = pneg %p50
      %p176 = pneg %p47
      %p177 = pneg %p71
      %p178 = pneg %p68
      %p179 = pneg %p99
      %p180 = pneg %p96
      %p181 = scmp.lt.s32.totalorder %s19, 1
      %s182 = scalar_select %p181, %s19, 1
      %p183 = scmp.lt.s32.totalorder %s20, 0
      %s184 = scalar_select %p183, %s20, 0
      %s185 = sadd.s32 %s184, %s182
      %s186 = smul.addr %s185, 8
      %s187 = scalar_lea.vmem %s2, %s186
      %p188 = pneg %p127
      %p189 = pneg %p124
      %p190 = scmp.lt.s32.totalorder %s19, 1
      %s191 = scalar_select %p190, %s19, 1
      %p192 = scmp.lt.s32.totalorder %s20, 0
      %s193 = scalar_select %p192, %s20, 0
      %s194 = sadd.s32 %s193, %s191
      %s195 = smul.addr %s194, 8
      %s196 = scalar_lea.vmem %s3, %s195
      %p197 = scmp.lt.s32.totalorder %s19, 1
      %s198 = scalar_select %p197, %s19, 1
      %p199 = scmp.lt.s32.totalorder %s20, 0
      %s200 = scalar_select %p199, %s20, 0
      %s201 = smul.addr %s198, 2
      %s202 = sadd.s32 %s200, %s201
      %s203 = smul.addr %s202, 8
      %s204 = scalar_lea.vmem %s0, %s203
      %p205 = scmp.lt.s32.totalorder %s19, 1
      %s206 = scalar_select %p205, %s19, 1
      %p207 = scmp.lt.s32.totalorder %s20, 0
      %s208 = scalar_select %p207, %s20, 0
      %s209 = sadd.s32 %s208, %s206
      %s210 = smul.addr %s209, 8
      %s211 = scalar_lea.vmem %s2, %s210
      %p212 = scmp.lt.s32.totalorder %s19, 1
      %s213 = scalar_select %p212, %s19, 1
      %p214 = scmp.lt.s32.totalorder %s20, 0
      %s215 = scalar_select %p214, %s20, 0
      %s216 = sadd.s32 %s215, %s213
      %s217 = smul.addr %s216, 8
      %s218 = scalar_lea.vmem %s3, %s217
      %v219 = vld [vmem:[%s1] sm:$0x7f]
      %v220 = vld [vmem:[%s204] sm:$0xff]
      %v221 = vld [vmem:[%s204 + $0x8] sm:$0x1]
      %vm222 = vcmask 72704
      %v224 = vsel %vm222, %v219, 0
      %vm226 = vcmask 1040384
      %v228 = vsel %vm226, %v221, 0
      %230 = vmatpush.msra.mxu0 0.0
      %231 = vmatpush.msra.mxu0 0.0
      %232 = vmatpush.msra.mxu0 0.0
      %233 = vmatpush.msra.mxu0 0.0
      %234 = vmatpush.msra.mxu0 0.0
      %235 = vmatpush.msra.mxu0 0.0
      %236 = vmatpush.msra.mxu0 0.0
      %237 = vmatpush.msra.mxu0 0.0
      %238 = vmatpush.msra.mxu0 0.0
      %239 = vmatpush.msra.mxu0 0.0
      %240 = vmatpush.msra.mxu0 0.0
      %241 = vmatpush.msra.mxu0 0.0
      %242 = vmatpush.msra.mxu0 0.0
      %243 = vmatpush.msra.mxu0 0.0
      %244 = vmatpush.msra.mxu0 %v228
      %245 = vmatpush.msra.mxu0 %v220
      %246 = vmatmul.f32.gmra.mxu0 %v224
      %v247 = vpop.f32.mrf.mxu0
      %v248 = vadd.f32 0.0, %v247
      %249 = vdwg.mxu0
      %vm250 = vcmask 522240
      %v251 = vsel %vm250, %v248, 0.0
      %252 = vadd.xlane.f32.xlu0 %v251
      %v253 = vpop.xlane.xlu0 %252
      %vm254 = vcmask 6144
      %255 = vst.msk [vmem:[%s211] sm:$0x7f] %vm254, %v253
      %v256 = vmul.f32 %v248, %v248
      %v257 = vsel %vm250, %v256, 0.0
      %258 = vadd.xlane.f32.xlu0 %v257
      %v259 = vpop.xlane.xlu0 %258
      %260 = vst.msk [vmem:[%s218] sm:$0x7f] %vm254, %v259
      %p261 = scmp.lt.s32.totalorder %s19, 1
      %s262 = scalar_select %p261, %s19, 1
      %p263 = scmp.lt.s32.totalorder %s20, 0
      %s264 = scalar_select %p263, %s20, 0
      %s265 = sadd.s32 %s264, %s262
      %s266 = smul.addr %s265, 8
      %s267 = scalar_lea.vmem %s2, %s266
      %p268 = scmp.lt.s32.totalorder %s19, 1
      %s269 = scalar_select %p268, %s19, 1
      %p270 = scmp.lt.s32.totalorder %s20, 0
      %s271 = scalar_select %p270, %s20, 0
      %s272 = sadd.s32 %s271, %s269
      %s273 = smul.addr %s272, 8
      %s274 = scalar_lea.vmem %s3, %s273
      // Predicated region
      $region29: #{initial_block.2} parent=27 // pred_check
        %p275 = pneg %p96
      $region30: #{initial_block.2} parent=27 // pred_check_branch
        %277 = sbr.rel (%p275) target = $region32
      $region31: #{initial_block.2} parent=27 // pred_region
        _
      $region32: #{initial_block.2} parent=27 // pred_fallthru
        _
      // Predicated region
      $region33: #{initial_block.2} parent=27 // pred_check
        %p278 = pneg %p124
      $region34: #{initial_block.2} parent=27 // pred_check_branch
        %280 = sbr.rel (%p278) target = $region36
      $region35: #{initial_block.2} parent=27 // pred_region
        _
      $region36: #{initial_block.2} parent=27 // pred_fallthru
        _
    $region28: #{initial_block.2} parent=5 // pred_fallthru
      _
    %p281 = scmp.le.s32.totalorder 2, %s10
    // Predicated region
    $region37: #{initial_block.2} parent=5 // pred_check
      %p282 = pneg %p281
    $region38: #{initial_block.2} parent=5 // pred_check_branch
      %284 = sbr.rel (%p282) target = $region40
    $region39: #{initial_block.2} parent=5 // pred_region
      %s285 = ssub.s32 %s10, 2
      // Predicated region
      $region41: #{initial_block.2} parent=39 // pred_check
        %p286 = pneg %p102
      $region42: #{initial_block.2} parent=39 // pred_check_branch
        %288 = sbr.rel (%p286) target = $region44
      $region43: #{initial_block.2} parent=39 // pred_region
        %p289 = scmp.lt.s32.totalorder %s21, 1
        %s290 = scalar_select %p289, %s21, 1
        %p291 = scmp.lt.s32.totalorder %s22, 0
        %s292 = scalar_select %p291, %s22, 0
        %s293 = sadd.s32 %s292, %s290
        %s294 = smul.addr %s293, 8
        %s295 = scalar_lea.vmem %s2, %s294
      $region44: #{initial_block.2} parent=39 // pred_fallthru
        _
      // Predicated region
      $region45: #{initial_block.2} parent=39 // pred_check
        %p296 = pneg %p130
      $region46: #{initial_block.2} parent=39 // pred_check_branch
        %298 = sbr.rel (%p296) target = $region48
      $region47: #{initial_block.2} parent=39 // pred_region
        %p299 = scmp.lt.s32.totalorder %s21, 1
        %s300 = scalar_select %p299, %s21, 1
        %p301 = scmp.lt.s32.totalorder %s22, 0
        %s302 = scalar_select %p301, %s22, 0
        %s303 = sadd.s32 %s302, %s300
        %s304 = smul.addr %s303, 8
        %s305 = scalar_lea.vmem %s3, %s304
      $region48: #{initial_block.2} parent=39 // pred_fallthru
        _
    $region40: #{initial_block.2} parent=5 // pred_fallthru
      _
  $region6: #{initial_block.2} parent=0 // loop_footer
    %s14 = sadd.s32 1, %s10
  $region7: #{initial_block.2} parent=0 // loop_footer_branch
    %9 = sbr.rel target = $region3
  $region8: #{initial_block.2} parent=0 // loop_exit
    _

// kernel: initial_block.3
$region0: #{initial_block.3}
  #allocation0 [shape = 'u32[]', space=smem, size = 0x4, offset = 0x4, fixed_abs, tag = 'smem constant byte address 0x4 - core index']
  #allocation1 [shape = 'u32[72,128]{1,0:T(1,128)}', space=vmem, size = 0x9000, scoped, tag = 'internal scratch']
  #allocation2 [shape = 'f32[1,1]{1,0:T(1,128)S(1)}', space=vmem, size = 0x200, scoped, tag = 'scoped memory for initial_block.3']
  #allocation3 [shape = 'f32[1]{0:T(128)S(6)}', space=smem, size = 0x200, scoped, tag = 'scoped memory for initial_block.3']
  %s0 = inlined_call_operand.vmem [shape: f32[2,9,64], index: 0, kind: input, shape index: {}]
  %s1 = inlined_call_operand.vmem [shape: f32[2,1,64], index: 1, kind: input, shape index: {}]
  %s2 = inlined_call_operand.vmem [shape: f32[7,9], index: 2, kind: input, shape index: {}]
  %s3 = inlined_call_operand.<no memory space> [shape: f32[1,1], index: 3, kind: input, shape index: {}]
  %s4 = inlined_call_operand.vmem [shape: f32[8,1], index: 4, kind: input, shape index: {}]
  %s5 = inlined_call_operand.<no memory space> [shape: f32[1], index: 5, kind: input, shape index: {}]
  %s6 = inlined_call_operand.vmem [shape: f32[2,8,64], index: 6, kind: output, shape index: {}]
  %s7 = sld [smem:[#allocation0]]
  $region57: #{initial_block.3} parent=0
    _
  %s9 = ssub.s32 1, %s7
  %s10 = scalar_select 0, %s9, %s7
  %v11 = vstv %s3
  %12 = vst [vmem:[#allocation2] sm:$0x1] %v11
  %13 = sst [smem:[#allocation3]] %s5
  loop: start=0, step=1, limit=4
  $region2: #{initial_block.3} parent=0 // loop_pre_header
    _
  $region3: #{initial_block.3} parent=0 // loop_header
    %s15 = sphi 0, %s19
    %p16 = scmp.ge.s32.totalorder %s15, 4
    %s22 = sphi 0, %s34
    %s23 = sphi 0, %s30
    %s24 = sphi 0, %s22
    %s25 = sphi 0, %s23
    %s26 = sphi 0, %s24
    %s27 = sphi 0, %s25
    %s39 = sphi 0, %s41
    %s42 = sphi 0, %s39
    %s43 = sphi 0, %s42
    %s59 = sphi 0, %s43
    %s67 = sphi 0, %s69
    %s70 = sphi 0, %s67
    %s71 = sphi 0, %s70
    %s87 = sphi 0, %s71
    %s91 = sphi 0, %s91
    %s93 = sphi 0, %s91
    %s94 = sphi 0, %s93
    %s108 = sphi 0, %s94
    %s112 = sphi 0, %s112
    %s114 = sphi 0, %s112
    %s115 = sphi 0, %s114
    %s129 = sphi 0, %s115
    %s133 = sphi 0, %s133
    %s135 = sphi 0, %s133
    %s136 = sphi 0, %s135
    %s150 = sphi 0, %s136
    %s154 = sphi 0, %s154
    %s156 = sphi 0, %s154
    %s157 = sphi 0, %s156
    %s171 = sphi 0, %s157
    %s179 = sphi 0, %s181
    %s182 = sphi 0, %s179
    %s183 = sphi 0, %s182
    %s199 = sphi 0, %s183
  $region4: #{initial_block.3} parent=0 // loop_header_branch
    %18 = sbr.rel (%p16) target = $region8
  $region5: #{initial_block.3} parent=0 // loop_body
    %s20 = ssub.s32 %s15, 1
    %s21 = ssub.s32 %s15, 2
    %s28 = sadd.s32 1, %s23
    %p29 = scmp.ge.s32.totalorder %s28, 1
    %s30 = scalar_select %p29, 0, %s28
    %s31 = sadd.s32 1, %s22
    %s32 = scalar_select %p29, %s31, %s22
    %p33 = scmp.ge.s32.totalorder %s32, 2
    %s34 = scalar_select %p33, 0, %s32
    %s35 = ssub.s32 %s22, %s34
    %s36 = ssub.s32 %s23, %s30
    %s37 = sor.u32 %s35, %s36
    %p38 = scmp.eq.s32.totalorder %s37, 0
    %s40 = sadd.s32 %s39, 1
    %s41 = scalar_select %p38, %s39, %s40
    %p44 = pneg %p38
    %p45 = scmp.eq.s32.totalorder %s15, 1
    %p46 = por %p44, %p45
    %p47 = scmp.ne.s32.totalorder %s39, %s42
    %p48 = scmp.eq.s32.totalorder %s15, 0
    %p49 = por %p47, %p48
    %p50 = scmp.ne.s32.totalorder %s39, %s42
    %p51 = scmp.eq.s32.totalorder %s20, 1
    %p52 = por %p50, %p51
    %p53 = scmp.ne.s32.totalorder %s42, %s43
    %p54 = scmp.eq.s32.totalorder %s20, 0
    %p55 = por %p53, %p54
    %p56 = scmp.ne.s32.totalorder %s42, %s43
    %p57 = scmp.eq.s32.totalorder %s21, 1
    %p58 = por %p56, %p57
    %p60 = scmp.ne.s32.totalorder %s43, %s59
    %p61 = scmp.eq.s32.totalorder %s21, 0
    %p62 = por %p60, %p61
    %s63 = ssub.s32 %s22, %s34
    %s64 = ssub.s32 %s23, %s30
    %s65 = sor.u32 %s63, %s64
    %p66 = scmp.eq.s32.totalorder %s65, 0
    %s68 = sadd.s32 %s67, 1
    %s69 = scalar_select %p66, %s67, %s68
    %p72 = pneg %p66
    %p73 = scmp.eq.s32.totalorder %s15, 1
    %p74 = por %p72, %p73
    %p75 = scmp.ne.s32.totalorder %s67, %s70
    %p76 = scmp.eq.s32.totalorder %s15, 0
    %p77 = por %p75, %p76
    %p78 = scmp.ne.s32.totalorder %s67, %s70
    %p79 = scmp.eq.s32.totalorder %s20, 1
    %p80 = por %p78, %p79
    %p81 = scmp.ne.s32.totalorder %s70, %s71
    %p82 = scmp.eq.s32.totalorder %s20, 0
    %p83 = por %p81, %p82
    %p84 = scmp.ne.s32.totalorder %s70, %s71
    %p85 = scmp.eq.s32.totalorder %s21, 1
    %p86 = por %p84, %p85
    %p88 = scmp.ne.s32.totalorder %s71, %s87
    %p89 = scmp.eq.s32.totalorder %s21, 0
    %p90 = por %p88, %p89
    %s92 = sadd.s32 %s91, 1
    %p95 = scmp.eq.s32.totalorder %s15, 1
    %p96 = scmp.ne.s32.totalorder %s91, %s93
    %p97 = scmp.eq.s32.totalorder %s15, 0
    %p98 = por %p96, %p97
    %p99 = scmp.ne.s32.totalorder %s91, %s93
    %p100 = scmp.eq.s32.totalorder %s20, 1
    %p101 = por %p99, %p100
    %p102 = scmp.ne.s32.totalorder %s93, %s94
    %p103 = scmp.eq.s32.totalorder %s20, 0
    %p104 = por %p102, %p103
    %p105 = scmp.ne.s32.totalorder %s93, %s94
    %p106 = scmp.eq.s32.totalorder %s21, 1
    %p107 = por %p105, %p106
    %p109 = scmp.ne.s32.totalorder %s94, %s108
    %p110 = scmp.eq.s32.totalorder %s21, 0
    %p111 = por %p109, %p110
    %s113 = sadd.s32 %s112, 1
    %p116 = scmp.eq.s32.totalorder %s15, 1
    %p117 = scmp.ne.s32.totalorder %s112, %s114
    %p118 = scmp.eq.s32.totalorder %s15, 0
    %p119 = por %p117, %p118
    %p120 = scmp.ne.s32.totalorder %s112, %s114
    %p121 = scmp.eq.s32.totalorder %s20, 1
    %p122 = por %p120, %p121
    %p123 = scmp.ne.s32.totalorder %s114, %s115
    %p124 = scmp.eq.s32.totalorder %s20, 0
    %p125 = por %p123, %p124
    %p126 = scmp.ne.s32.totalorder %s114, %s115
    %p127 = scmp.eq.s32.totalorder %s21, 1
    %p128 = por %p126, %p127
    %p130 = scmp.ne.s32.totalorder %s115, %s129
    %p131 = scmp.eq.s32.totalorder %s21, 0
    %p132 = por %p130, %p131
    %s134 = sadd.s32 %s133, 1
    %p137 = scmp.eq.s32.totalorder %s15, 1
    %p138 = scmp.ne.s32.totalorder %s133, %s135
    %p139 = scmp.eq.s32.totalorder %s15, 0
    %p140 = por %p138, %p139
    %p141 = scmp.ne.s32.totalorder %s133, %s135
    %p142 = scmp.eq.s32.totalorder %s20, 1
    %p143 = por %p141, %p142
    %p144 = scmp.ne.s32.totalorder %s135, %s136
    %p145 = scmp.eq.s32.totalorder %s20, 0
    %p146 = por %p144, %p145
    %p147 = scmp.ne.s32.totalorder %s135, %s136
    %p148 = scmp.eq.s32.totalorder %s21, 1
    %p149 = por %p147, %p148
    %p151 = scmp.ne.s32.totalorder %s136, %s150
    %p152 = scmp.eq.s32.totalorder %s21, 0
    %p153 = por %p151, %p152
    %s155 = sadd.s32 %s154, 1
    %p158 = scmp.eq.s32.totalorder %s15, 1
    %p159 = scmp.ne.s32.totalorder %s154, %s156
    %p160 = scmp.eq.s32.totalorder %s15, 0
    %p161 = por %p159, %p160
    %p162 = scmp.ne.s32.totalorder %s154, %s156
    %p163 = scmp.eq.s32.totalorder %s20, 1
    %p164 = por %p162, %p163
    %p165 = scmp.ne.s32.totalorder %s156, %s157
    %p166 = scmp.eq.s32.totalorder %s20, 0
    %p167 = por %p165, %p166
    %p168 = scmp.ne.s32.totalorder %s156, %s157
    %p169 = scmp.eq.s32.totalorder %s21, 1
    %p170 = por %p168, %p169
    %p172 = scmp.ne.s32.totalorder %s157, %s171
    %p173 = scmp.eq.s32.totalorder %s21, 0
    %p174 = por %p172, %p173
    %s175 = ssub.s32 %s22, %s34
    %s176 = ssub.s32 %s23, %s30
    %s177 = sor.u32 %s175, %s176
    %p178 = scmp.eq.s32.totalorder %s177, 0
    %s180 = sadd.s32 %s179, 1
    %s181 = scalar_select %p178, %s179, %s180
    %p184 = pneg %p178
    %p185 = scmp.eq.s32.totalorder %s15, 1
    %p186 = por %p184, %p185
    %p187 = scmp.ne.s32.totalorder %s179, %s182
    %p188 = scmp.eq.s32.totalorder %s15, 0
    %p189 = por %p187, %p188
    %p190 = scmp.ne.s32.totalorder %s179, %s182
    %p191 = scmp.eq.s32.totalorder %s20, 1
    %p192 = por %p190, %p191
    %p193 = scmp.ne.s32.totalorder %s182, %s183
    %p194 = scmp.eq.s32.totalorder %s20, 0
    %p195 = por %p193, %p194
    %p196 = scmp.ne.s32.totalorder %s182, %s183
    %p197 = scmp.eq.s32.totalorder %s21, 1
    %p198 = por %p196, %p197
    %p200 = scmp.ne.s32.totalorder %s183, %s199
    %p201 = scmp.eq.s32.totalorder %s21, 0
    %p202 = por %p200, %p201
    %p203 = scmp.le.s32.totalorder 1, %s15
    %p204 = scmp.lt.s32.totalorder %s15, 3
    %p205 = pnand %p203, %p204
    %p206 = pneg %p205
    // Predicated region
    $region9: #{initial_block.3} parent=5 // pred_check
      _
    $region10: #{initial_block.3} parent=5 // pred_check_branch
      %208 = sbr.rel (%p205) target = $region12
    $region11: #{initial_block.3} parent=5 // pred_region
      %s209 = ssub.s32 %s15, 1
      // Predicated region
      $region13: #{initial_block.3} parent=11 // pred_check
        %p210 = pneg %p104
      $region14: #{initial_block.3} parent=11 // pred_check_branch
        %212 = sbr.rel (%p210) target = $region16
      $region15: #{initial_block.3} parent=11 // pred_region
        _
      $region16: #{initial_block.3} parent=11 // pred_fallthru
        _
      // Predicated region
      $region17: #{initial_block.3} parent=11 // pred_check
        %p213 = pneg %p125
      $region18: #{initial_block.3} parent=11 // pred_check_branch
        %215 = sbr.rel (%p213) target = $region20
      $region19: #{initial_block.3} parent=11 // pred_region
        _
      $region20: #{initial_block.3} parent=11 // pred_fallthru
        _
      // Predicated region
      $region21: #{initial_block.3} parent=11 // pred_check
        %p216 = pneg %p146
      $region22: #{initial_block.3} parent=11 // pred_check_branch
        %218 = sbr.rel (%p216) target = $region24
      $region23: #{initial_block.3} parent=11 // pred_region
        _
      $region24: #{initial_block.3} parent=11 // pred_fallthru
        _
      // Predicated region
      $region25: #{initial_block.3} parent=11 // pred_check
        %p219 = pneg %p167
      $region26: #{initial_block.3} parent=11 // pred_check_branch
        %221 = sbr.rel (%p219) target = $region28
      $region27: #{initial_block.3} parent=11 // pred_region
        _
      $region28: #{initial_block.3} parent=11 // pred_fallthru
        _
    $region12: #{initial_block.3} parent=5 // pred_fallthru
      _
    %p222 = scmp.lt.s32.totalorder %s15, 2
    // Predicated region
    $region29: #{initial_block.3} parent=5 // pred_check
      %p223 = pneg %p222
    $region30: #{initial_block.3} parent=5 // pred_check_branch
      %225 = sbr.rel (%p223) target = $region32
    $region31: #{initial_block.3} parent=5 // pred_region
      // Predicated region
      $region33: #{initial_block.3} parent=31 // pred_check
        %p226 = pneg %p49
      $region34: #{initial_block.3} parent=31 // pred_check_branch
        %228 = sbr.rel (%p226) target = $region36
      $region35: #{initial_block.3} parent=31 // pred_region
        %p229 = scmp.lt.s32.totalorder %s22, 1
        %s230 = scalar_select %p229, %s22, 1
        %p231 = scmp.lt.s32.totalorder %s23, 0
        %s232 = scalar_select %p231, %s23, 0
        %s233 = smul.addr %s230, 2
        %s234 = sadd.s32 %s232, %s233
        %s235 = smul.addr %s234, 8
        %s236 = scalar_lea.vmem %s0, %s235
      $region36: #{initial_block.3} parent=31 // pred_fallthru
        _
      // Predicated region
      $region37: #{initial_block.3} parent=31 // pred_check
        %p237 = pneg %p77
      $region38: #{initial_block.3} parent=31 // pred_check_branch
        %239 = sbr.rel (%p237) target = $region40
      $region39: #{initial_block.3} parent=31 // pred_region
        %p240 = scmp.lt.s32.totalorder %s22, 1
        %s241 = scalar_select %p240, %s22, 1
        %p242 = scmp.lt.s32.totalorder %s23, 0
        %s243 = scalar_select %p242, %s23, 0
        %s244 = sadd.s32 %s243, %s241
        %s245 = scalar_lea.vmem %s1, %s244
      $region40: #{initial_block.3} parent=31 // pred_fallthru
        _
    $region32: #{initial_block.3} parent=5 // pred_fallthru
      _
    %p246 = scmp.le.s32.totalorder 1, %s15
    %p247 = scmp.lt.s32.totalorder %s15, 3
    %p248 = pnand %p246, %p247
    %p249 = pneg %p248
    // Predicated region
    $region41: #{initial_block.3} parent=5 // pred_check
      _
    $region42: #{initial_block.3} parent=5 // pred_check_branch
      %251 = sbr.rel (%p248) target = $region44
    $region43: #{initial_block.3} parent=5 // pred_region
      %s252 = ssub.s32 %s15, 1
      %p253 = scmp.lt.s32.totalorder %s24, 1
      %s254 = scalar_select %p253, %s24, 1
      %p255 = scmp.lt.s32.totalorder %s25, 0
      %s256 = scalar_select %p255, %s25, 0
      %s257 = smul.addr %s254, 2
      %s258 = sadd.s32 %s256, %s257
      %s259 = smul.addr %s258, 8
      %s260 = scalar_lea.vmem %s0, %s259
      %p261 = pneg %p55
      %p262 = pneg %p52
      %p263 = scmp.lt.s32.totalorder %s24, 1
      %s264 = scalar_select %p263, %s24, 1
      %p265 = scmp.lt.s32.totalorder %s25, 0
      %s266 = scalar_select %p265, %s25, 0
      %s267 = sadd.s32 %s266, %s264
      %s268 = scalar_lea.vmem %s1, %s267
      %p269 = pneg %p83
      %p270 = pneg %p80
      %p271 = pneg %p104
      %p272 = pneg %p101
      %p273 = pneg %p125
      %p274 = pneg %p122
      %p275 = pneg %p146
      %p276 = pneg %p143
      %p277 = pneg %p167
      %p278 = pneg %p164
      %p279 = pneg %p195
      %p280 = pneg %p192
      %p281 = scmp.lt.s32.totalorder %s24, 1
      %s282 = scalar_select %p281, %s24, 1
      %p283 = scmp.lt.s32.totalorder %s25, 0
      %s284 = scalar_select %p283, %s25, 0
      %s285 = sadd.s32 %s284, %s282
      %s286 = smul.addr %s285, 8
      %s287 = scalar_lea.vmem %s6, %s286
      %p288 = scmp.lt.s32.totalorder %s24, 1
      %s289 = scalar_select %p288, %s24, 1
      %p290 = scmp.lt.s32.totalorder %s25, 0
      %s291 = scalar_select %p290, %s25, 0
      %s292 = smul.addr %s289, 2
      %s293 = sadd.s32 %s291, %s292
      %s294 = smul.addr %s293, 8
      %s295 = scalar_lea.vmem %s0, %s294
      %p296 = scmp.lt.s32.totalorder %s24, 1
      %s297 = scalar_select %p296, %s24, 1
      %p298 = scmp.lt.s32.totalorder %s25, 0
      %s299 = scalar_select %p298, %s25, 0
      %s300 = sadd.s32 %s299, %s297
      %s301 = scalar_lea.vmem %s1, %s300
      %p302 = scmp.lt.s32.totalorder %s24, 1
      %s303 = scalar_select %p302, %s24, 1
      %p304 = scmp.lt.s32.totalorder %s25, 0
      %s305 = scalar_select %p304, %s25, 0
      %s306 = sadd.s32 %s305, %s303
      %s307 = smul.addr %s306, 8
      %s308 = scalar_lea.vmem %s6, %s307
      %v309 = vld [vmem:[%s2] sm:$0x7f]
      %v310 = vld [vmem:[%s295] sm:$0xff]
      %v311 = vld [vmem:[%s295 + $0x8] sm:$0x1]
      %s312 = sld [smem:[#allocation3]]
      %v313 = vld [vmem:[%s301] sm:$0x1]
      %v314 = vld [vmem:[#allocation2] sm:$0x1]
      %316 = vset.pattern.permute.xlu0 0
      %317 = vperm.xlu0 %316, %v314
      %v318 = vpop.permute.xlu0 %317
      %v320 = vperm.slane %v318, 0
      %v321 = vmul.f32 %v313, %v320
      %v322 = vld [vmem:[%s4] sm:$0x1]
      %324 = vset.pattern.permute.xlu0 0
      %325 = vperm.xlu0 %324, %v322
      %v326 = vpop.permute.xlu0 %325
      %v328 = vadd.f32 %v321, %v326
      %v329 = vld [vmem:[%s4 + $0x1] sm:$0x7f]
      %331 = vset.pattern.permute.xlu0 0
      %332 = vperm.xlu0 %331, %v329
      %v333 = vpop.permute.xlu0 %332
      %vm335 = vcmask 72704
      %v337 = vsel %vm335, %v309, 0
      %vm339 = vcmask 1040384
      %v341 = vsel %vm339, %v311, 0
      %343 = vmatpush.msra.mxu0 0.0
      %344 = vmatpush.msra.mxu0 0.0
      %345 = vmatpush.msra.mxu0 0.0
      %346 = vmatpush.msra.mxu0 0.0
      %347 = vmatpush.msra.mxu0 0.0
      %348 = vmatpush.msra.mxu0 0.0
      %349 = vmatpush.msra.mxu0 0.0
      %350 = vmatpush.msra.mxu0 0.0
      %351 = vmatpush.msra.mxu0 0.0
      %352 = vmatpush.msra.mxu0 0.0
      %353 = vmatpush.msra.mxu0 0.0
      %354 = vmatpush.msra.mxu0 0.0
      %355 = vmatpush.msra.mxu0 0.0
      %356 = vmatpush.msra.mxu0 0.0
      %357 = vmatpush.msra.mxu0 %v341
      %358 = vmatpush.msra.mxu0 %v310
      %359 = vmatmul.f32.gmra.mxu0 %v337
      %v360 = vpop.f32.mrf.mxu0
      %v361 = vadd.f32 %v333, %v360
      %362 = vdwg.mxu0
      %vm363 = vcmp.ge.f32.partialorder %v328, 0.0
      %v364 = vstv %s312
      %v365 = vmul.f32 %v364, %v328
      %v366 = vsel %vm363, %v328, %v365
      %vm367 = vcmask 516096
      %368 = vst.msk [vmem:[%s308] sm:$0x1] %vm367, %v366
      %vm369 = vcmp.ge.f32.partialorder %v361, 0.0
      %v370 = vmul.f32 %v364, %v361
      %v371 = vsel %vm369, %v361, %v370
      %vm372 = vcmask 522240
      %373 = vst.msk [vmem:[%s308 + $0x1] sm:$0x7f] %vm372, %v371
      %p374 = scmp.lt.s32.totalorder %s24, 1
      %s375 = scalar_select %p374, %s24, 1
      %p376 = scmp.lt.s32.totalorder %s25, 0
      %s377 = scalar_select %p376, %s25, 0
      %s378 = sadd.s32 %s377, %s375
      %s379 = smul.addr %s378, 8
      %s380 = scalar_lea.vmem %s6, %s379
      // Predicated region
      $region45: #{initial_block.3} parent=43 // pred_check
        %p381 = pneg %p192
      $region46: #{initial_block.3} parent=43 // pred_check_branch
        %383 = sbr.rel (%p381) target = $region48
      $region47: #{initial_block.3} parent=43 // pred_region
        _
      $region48: #{initial_block.3} parent=43 // pred_fallthru
        _
    $region44: #{initial_block.3} parent=5 // pred_fallthru
      _
    %p384 = scmp.le.s32.totalorder 2, %s15
    // Predicated region
    $region49: #{initial_block.3} parent=5 // pred_check
      %p385 = pneg %p384
    $region50: #{initial_block.3} parent=5 // pred_check_branch
      %387 = sbr.rel (%p385) target = $region52
    $region51: #{initial_block.3} parent=5 // pred_region
      %s388 = ssub.s32 %s15, 2
      // Predicated region
      $region53: #{initial_block.3} parent=51 // pred_check
        %p389 = pneg %p198
      $region54: #{initial_block.3} parent=51 // pred_check_branch
        %391 = sbr.rel (%p389) target = $region56
      $region55: #{initial_block.3} parent=51 // pred_region
        %p392 = scmp.lt.s32.totalorder %s26, 1
        %s393 = scalar_select %p392, %s26, 1
        %p394 = scmp.lt.s32.totalorder %s27, 0
        %s395 = scalar_select %p394, %s27, 0
        %s396 = sadd.s32 %s395, %s393
        %s397 = smul.addr %s396, 8
        %s398 = scalar_lea.vmem %s6, %s397
      $region56: #{initial_block.3} parent=51 // pred_fallthru
        _
    $region52: #{initial_block.3} parent=5 // pred_fallthru
      _
  $region6: #{initial_block.3} parent=0 // loop_footer
    %s19 = sadd.s32 1, %s15
  $region7: #{initial_block.3} parent=0 // loop_footer_branch
    %14 = sbr.rel target = $region3
  $region8: #{initial_block.3} parent=0 // loop_exit
    _

</llo_original>
